<compile_context>
chip_gen: v7x
topology: tpu7x:2x2x1
jax: 0.10.0
libtpu: 0.0.40
codegen_flags: <defaults>
</compile_context>

<pallas_src>
import jax
import jax.numpy as jnp
from jax import lax
from jax.experimental import pallas as pl
from jax.experimental.pallas import tpu as pltpu

EMBED_DIM = 300
HIDDEN1 = 150
HIDDEN2 = 150


def _round_up(n, m):
    return ((n + m - 1) // m) * m


def _pad_to(x, shape):
    return jnp.pad(x, [(0, s - d) for d, s in zip(x.shape, shape)])


# fc3 as w3 @ h^T (contract both operands' last dim) -> lane-dense [*, TB] row.
TRANS_B_DIM_NUMBERS = (((1,), (1,)), ((), ()))


def lame_fused_kernel(ids_ref, emb_ref, w1_ref, b1_ref, w2_ref, b2_ref,
                      w3_ref, b3_ref, out_ref):
    # ids_ref : VMEM [TB, T]          int32  token ids for this batch tile
    # emb_ref : VMEM [V_pad, D_pad]   cdt    zero-padded embedding table
    # w1_ref  : VMEM [D_pad, H1_pad]  cdt    fc1 weight, pre-scaled by 1/T
    # b1_ref  : VMEM [1, H1_pad]      f32
    # w2_ref  : VMEM [H1_pad, H2_pad] cdt
    # b2_ref  : VMEM [1, H2_pad]      f32
    # w3_ref  : VMEM [8, H2_pad]      cdt    fc3 weight row, replicated x8
    # b3_ref  : SMEM [1, 1]           f32
    # out_ref : VMEM [1, TB]          f32    lane-dense output row for the tile
    tb, seq_len = ids_ref.shape
    v_pad = emb_ref.shape[0]
    cdt = emb_ref.dtype

    # --- Embedding lookup + sum-pool on the MXU ------------------------------
    # counts[b, v] = #occurrences of vocab id v in row b, so
    #   sum_t emb[ids[b, t], :] == counts @ emb      (exact; counts are ints).
    # The mean's 1/T is folded into w1 at param-prep time.
    ids = ids_ref[...]                                            # [TB, T]
    iota_v = lax.broadcasted_iota(jnp.int32, (tb, v_pad), 1)      # [TB, V_pad]
    counts = jnp.zeros((tb, v_pad), jnp.float32)
    for t in range(seq_len):        # static unroll; T is small in this model
        counts = counts + (ids[:, t:t + 1] == iota_v).astype(jnp.float32)
    pooled = jnp.dot(counts.astype(cdt), emb_ref[...],
                     preferred_element_type=jnp.float32)          # [TB, D_pad]

    # --- fc1 + ReLU (MXU, f32 accumulate) ------------------------------------
    h = jnp.dot(pooled.astype(cdt), w1_ref[...],
                preferred_element_type=jnp.float32)
    h = jnp.maximum(h + b1_ref[...], 0.0)                         # [TB, H1_pad]

    # --- fc2 + ReLU -----------------------------------------------------------
    h = jnp.dot(h.astype(cdt), w2_ref[...],
                preferred_element_type=jnp.float32)
    h = jnp.maximum(h + b2_ref[...], 0.0)                         # [TB, H2_pad]

    # --- fc3 -> lane-dense output row -----------------------------------------
    # w3 stored as 8 identical sublane rows so the matmul has an aligned M=8;
    # the result is already [*, TB] lane-dense (no transpose, no broadcast-128
    # writeback).  Only row 0 is kept.
    y = lax.dot_general(w3_ref[...], h.astype(cdt), TRANS_B_DIM_NUMBERS,
                        preferred_element_type=jnp.float32)       # [8, TB]
    out_ref[...] = y[0:1, :] + b3_ref[0, 0]


def lame_model_forward(x, lengths, params, *, batch_tile=128,
                       compute_dtype=jnp.bfloat16):
    """x: [B, T] int32 token ids.  lengths is accepted for API parity with the
    PyTorch module but unused — the reference forward mean-pools over all T
    positions regardless of lengths."""
    del lengths
    assert batch_tile % 128 == 0
    emb_table, w1, b1, w2, b2, w3, b3 = params
    B, T = x.shape
    V, D = emb_table.shape
    H1, H2 = w1.shape[1], w2.shape[1]

    # Lane/sublane-aligned padded sizes (zero padding is numerically exact).
    D_pad = _round_up(D, 128)
    H1_pad = _round_up(H1, 128)
    H2_pad = _round_up(H2, 128)
    V_pad = _round_up(V, 128)     # vocab ids live on the lane axis of counts

    # Batch tile: as big as possible (fills MXU rows), capped by the padded
    # batch.  If the batch splits into several tiles, the tile is a multiple
    # of 128 so the lane-dense output blocks stay unmasked.
    B_pad8 = _round_up(B, 8)
    TB = B_pad8 if B_pad8 <= batch_tile else batch_tile
    B_pad = _round_up(B, TB)

    cdt = compute_dtype
    # Param packing: zero-pad (exact), fold 1/T into w1, cast MXU operands to
    # the compute dtype (biases and accumulation stay f32).
    emb_p = _pad_to(emb_table.astype(jnp.float32), (V_pad, D_pad)).astype(cdt)
    w1_p = _pad_to((w1 / T).astype(jnp.float32), (D_pad, H1_pad)).astype(cdt)
    b1_p = _pad_to(b1.reshape(1, -1).astype(jnp.float32), (1, H1_pad))
    w2_p = _pad_to(w2.astype(jnp.float32), (H1_pad, H2_pad)).astype(cdt)
    b2_p = _pad_to(b2.reshape(1, -1).astype(jnp.float32), (1, H2_pad))
    w3_p = _pad_to(jnp.tile(w3.reshape(1, -1).astype(jnp.float32), (8, 1)),
                   (8, H2_pad)).astype(cdt)
    b3_s = b3.reshape(1, 1).astype(jnp.float32)

    # Pad extra batch rows with an out-of-vocab id: they pool to zero and are
    # sliced off below.  ids are a small per-tile VMEM input (no 2-D SMEM
    # padding blow-up).
    ids = jnp.pad(x.astype(jnp.int32), ((0, B_pad - B), (0, 0)),
                  constant_values=V)

    grid = (B_pad // TB,)
    itm = jnp.dtype(cdt).itemsize
    flops = int(B_pad) * 2 * (V_pad * D_pad + D_pad * H1_pad
                              + H1_pad * H2_pad + H2_pad)
    bytes_accessed = int(
        ids.size * 4
        + (V_pad * D_pad + D_pad * H1_pad + H1_pad * H2_pad + 8 * H2_pad) * itm
        + (H1_pad + H2_pad + 1) * 4
        + B_pad * 4)

    out = pl.pallas_call(
        lame_fused_kernel,
        out_shape=jax.ShapeDtypeStruct((1, B_pad), jnp.float32),
        grid_spec=pltpu.PrefetchScalarGridSpec(
            num_scalar_prefetch=0,
            grid=grid,
            in_specs=[
                pl.BlockSpec((TB, T), lambda i: (i, 0)),            # ids
                pl.BlockSpec((V_pad, D_pad), lambda i: (0, 0)),     # emb
                pl.BlockSpec((D_pad, H1_pad), lambda i: (0, 0)),    # w1 / T
                pl.BlockSpec((1, H1_pad), lambda i: (0, 0)),        # b1
                pl.BlockSpec((H1_pad, H2_pad), lambda i: (0, 0)),   # w2
                pl.BlockSpec((1, H2_pad), lambda i: (0, 0)),        # b2
                pl.BlockSpec((8, H2_pad), lambda i: (0, 0)),        # w3 rows
                pl.BlockSpec(memory_space=pltpu.MemorySpace.SMEM),  # b3
            ],
            out_specs=pl.BlockSpec((1, TB), lambda i: (0, i)),
        ),
        compiler_params=pltpu.CompilerParams(
            dimension_semantics=("parallel",),   # batch tiles over TCs (v7x)
            vmem_limit_bytes=32 * 1024 * 1024,
        ),
        cost_estimate=pl.CostEstimate(
            flops=flops, transcendentals=0, bytes_accessed=bytes_accessed),
    )(ids, emb_p, w1_p, b1_p, w2_p, b2_p, w3_p, b3_s)

    return out[0, :B]                                              # squeeze(1)


def init_params(key, vocab_size):
    ks = jax.random.split(key, 7)
    emb_table = jax.random.normal(ks[0], (vocab_size, EMBED_DIM), jnp.float32)
    # nn.Linear-style init (uniform +-1/sqrt(fan_in)); weights stored [in, out].
    def linear(kw, kb, fan_in, fan_out):
        bound = 1.0 / jnp.sqrt(fan_in)
        w = jax.random.uniform(kw, (fan_in, fan_out), jnp.float32, -bound, bound)
        b = jax.random.uniform(kb, (fan_out,), jnp.float32, -bound, bound)
        return w, b
    w1, b1 = linear(ks[1], ks[2], EMBED_DIM, HIDDEN1)
    w2, b2 = linear(ks[3], ks[4], HIDDEN1, HIDDEN2)
    w3, b3 = linear(ks[5], ks[6], HIDDEN2, 1)
    return (emb_table, w1, b1, w2, b2, w3, b3)


if __name__ == "__main__":
    key = jax.random.PRNGKey(0)
    k_params, k_x = jax.random.split(key)

    B, T, VOCAB = 16, 8, 50
    params = init_params(k_params, VOCAB)
    x = jax.random.randint(k_x, (B, T), 0, VOCAB, dtype=jnp.int32)
    lengths = jnp.full((B,), T, dtype=jnp.int32)

    forward = jax.jit(lame_model_forward)
    out = jax.block_until_ready(forward(x, lengths, params))

    # Pure-JAX f32 reference with the exact PyTorch forward semantics.
    emb_table, w1, b1, w2, b2, w3, b3 = params
    emb = jnp.take(emb_table, x, axis=0)
    pooled = emb.mean(axis=1)
    h = jnp.maximum(pooled @ w1 + b1, 0.0)
    h = jnp.maximum(h @ w2 + b2, 0.0)
    ref = (h @ w3 + b3)[:, 0]

    assert out.shape == (B,)
    # bf16 MXU operands (f32 accumulate) vs. pure-f32 reference => loose tol.
    assert jnp.allclose(out, ref, atol=3e-2, rtol=3e-2), \
        float(jnp.max(jnp.abs(out - ref)))

    print("KERNEL_OK")
</pallas_src>

<mosaic_0001>
module attributes {stable_mosaic.version = 11 : i64} {
  func.func @lame_fused_kernel(%arg0: i32, %arg1: memref<16x8xi32, #tpu.memory_space<vmem>>, %arg2: memref<128x384xbf16, #tpu.memory_space<vmem>>, %arg3: memref<384x256xbf16, #tpu.memory_space<vmem>>, %arg4: memref<1x256xf32, #tpu.memory_space<vmem>>, %arg5: memref<256x256xbf16, #tpu.memory_space<vmem>>, %arg6: memref<1x256xf32, #tpu.memory_space<vmem>>, %arg7: memref<8x256xbf16, #tpu.memory_space<vmem>>, %arg8: memref<1x1xf32, #tpu.memory_space<smem>>, %arg9: memref<1x16xf32, #tpu.memory_space<vmem>>) attributes {dimension_semantics = [#tpu.dimension_semantics<parallel>], iteration_bounds = array<i64: 1>, scalar_prefetch = 0 : i64, scratch_operands = 0 : i64, tpu.core_type = #tpu.core_type<tc>, window_params = [{transform_indices = @transform_0, window_bounds = array<i64: 16, 8>}, {pipeline_mode = #tpu.pipeline_mode<synchronous>, transform_indices = @transform_1, window_bounds = array<i64: 128, 384>}, {pipeline_mode = #tpu.pipeline_mode<synchronous>, transform_indices = @transform_2, window_bounds = array<i64: 384, 256>}, {pipeline_mode = #tpu.pipeline_mode<synchronous>, transform_indices = @transform_3, window_bounds = array<i64: 1, 256>}, {pipeline_mode = #tpu.pipeline_mode<synchronous>, transform_indices = @transform_4, window_bounds = array<i64: 256, 256>}, {pipeline_mode = #tpu.pipeline_mode<synchronous>, transform_indices = @transform_5, window_bounds = array<i64: 1, 256>}, {pipeline_mode = #tpu.pipeline_mode<synchronous>, transform_indices = @transform_6, window_bounds = array<i64: 8, 256>}, {transform_indices = @transform_7, window_bounds = array<i64: 1, 1>}, {transform_indices = @transform_8, window_bounds = array<i64: 1, 16>}]} {
    %c0 = arith.constant 0 : index
    %c0_0 = arith.constant 0 : index
    %0 = vector.load %arg1[%c0, %c0_0] : memref<16x8xi32, #tpu.memory_space<vmem>>, vector<16x8xi32>
    %1 = tpu.iota {dimensions = array<i32: 1>} : vector<16x128xi32>
    %cst = arith.constant 0.000000e+00 : f32
    %2 = vector.broadcast %cst : f32 to vector<16x128xf32>
    %3 = vector.extract_strided_slice %0 {offsets = [0, 0], sizes = [16, 1], strides = [1, 1]} : vector<16x8xi32> to vector<16x1xi32>
    %4 = vector.broadcast %3 : vector<16x1xi32> to vector<16x128xi32>
    %5 = arith.cmpi eq, %4, %1 : vector<16x128xi32>
    %6 = arith.extui %5 : vector<16x128xi1> to vector<16x128xi32>
    %7 = arith.sitofp %6 : vector<16x128xi32> to vector<16x128xf32>
    %8 = arith.addf %2, %7 : vector<16x128xf32>
    %9 = vector.extract_strided_slice %0 {offsets = [0, 1], sizes = [16, 1], strides = [1, 1]} : vector<16x8xi32> to vector<16x1xi32>
    %10 = vector.broadcast %9 : vector<16x1xi32> to vector<16x128xi32>
    %11 = arith.cmpi eq, %10, %1 : vector<16x128xi32>
    %12 = arith.extui %11 : vector<16x128xi1> to vector<16x128xi32>
    %13 = arith.sitofp %12 : vector<16x128xi32> to vector<16x128xf32>
    %14 = arith.addf %8, %13 : vector<16x128xf32>
    %15 = vector.extract_strided_slice %0 {offsets = [0, 2], sizes = [16, 1], strides = [1, 1]} : vector<16x8xi32> to vector<16x1xi32>
    %16 = vector.broadcast %15 : vector<16x1xi32> to vector<16x128xi32>
    %17 = arith.cmpi eq, %16, %1 : vector<16x128xi32>
    %18 = arith.extui %17 : vector<16x128xi1> to vector<16x128xi32>
    %19 = arith.sitofp %18 : vector<16x128xi32> to vector<16x128xf32>
    %20 = arith.addf %14, %19 : vector<16x128xf32>
    %21 = vector.extract_strided_slice %0 {offsets = [0, 3], sizes = [16, 1], strides = [1, 1]} : vector<16x8xi32> to vector<16x1xi32>
    %22 = vector.broadcast %21 : vector<16x1xi32> to vector<16x128xi32>
    %23 = arith.cmpi eq, %22, %1 : vector<16x128xi32>
    %24 = arith.extui %23 : vector<16x128xi1> to vector<16x128xi32>
    %25 = arith.sitofp %24 : vector<16x128xi32> to vector<16x128xf32>
    %26 = arith.addf %20, %25 : vector<16x128xf32>
    %27 = vector.extract_strided_slice %0 {offsets = [0, 4], sizes = [16, 1], strides = [1, 1]} : vector<16x8xi32> to vector<16x1xi32>
    %28 = vector.broadcast %27 : vector<16x1xi32> to vector<16x128xi32>
    %29 = arith.cmpi eq, %28, %1 : vector<16x128xi32>
    %30 = arith.extui %29 : vector<16x128xi1> to vector<16x128xi32>
    %31 = arith.sitofp %30 : vector<16x128xi32> to vector<16x128xf32>
    %32 = arith.addf %26, %31 : vector<16x128xf32>
    %33 = vector.extract_strided_slice %0 {offsets = [0, 5], sizes = [16, 1], strides = [1, 1]} : vector<16x8xi32> to vector<16x1xi32>
    %34 = vector.broadcast %33 : vector<16x1xi32> to vector<16x128xi32>
    %35 = arith.cmpi eq, %34, %1 : vector<16x128xi32>
    %36 = arith.extui %35 : vector<16x128xi1> to vector<16x128xi32>
    %37 = arith.sitofp %36 : vector<16x128xi32> to vector<16x128xf32>
    %38 = arith.addf %32, %37 : vector<16x128xf32>
    %39 = vector.extract_strided_slice %0 {offsets = [0, 6], sizes = [16, 1], strides = [1, 1]} : vector<16x8xi32> to vector<16x1xi32>
    %40 = vector.broadcast %39 : vector<16x1xi32> to vector<16x128xi32>
    %41 = arith.cmpi eq, %40, %1 : vector<16x128xi32>
    %42 = arith.extui %41 : vector<16x128xi1> to vector<16x128xi32>
    %43 = arith.sitofp %42 : vector<16x128xi32> to vector<16x128xf32>
    %44 = arith.addf %38, %43 : vector<16x128xf32>
    %45 = vector.extract_strided_slice %0 {offsets = [0, 7], sizes = [16, 1], strides = [1, 1]} : vector<16x8xi32> to vector<16x1xi32>
    %46 = vector.broadcast %45 : vector<16x1xi32> to vector<16x128xi32>
    %47 = arith.cmpi eq, %46, %1 : vector<16x128xi32>
    %48 = arith.extui %47 : vector<16x128xi1> to vector<16x128xi32>
    %49 = arith.sitofp %48 : vector<16x128xi32> to vector<16x128xf32>
    %50 = arith.addf %44, %49 : vector<16x128xf32>
    %51 = arith.truncf %50 : vector<16x128xf32> to vector<16x128xbf16>
    %c0_1 = arith.constant 0 : index
    %c0_2 = arith.constant 0 : index
    %52 = vector.load %arg2[%c0_1, %c0_2] : memref<128x384xbf16, #tpu.memory_space<vmem>>, vector<128x384xbf16>
    %cst_3 = arith.constant dense<0.000000e+00> : vector<16x384xf32>
    %53 = tpu.matmul %51, %52, %cst_3 {dimension_numbers = #tpu.dot_dimension_numbers<[1], [0], [0], [1], [0, 0, 1, 1], [], []>} : vector<16x128xbf16>, vector<128x384xbf16>, vector<16x384xf32> -> vector<16x384xf32>
    %54 = arith.truncf %53 : vector<16x384xf32> to vector<16x384xbf16>
    %c0_4 = arith.constant 0 : index
    %c0_5 = arith.constant 0 : index
    %55 = vector.load %arg3[%c0_4, %c0_5] : memref<384x256xbf16, #tpu.memory_space<vmem>>, vector<384x256xbf16>
    %cst_6 = arith.constant dense<0.000000e+00> : vector<16x256xf32>
    %56 = tpu.matmul %54, %55, %cst_6 {dimension_numbers = #tpu.dot_dimension_numbers<[1], [0], [0], [1], [0, 0, 1, 1], [], []>} : vector<16x384xbf16>, vector<384x256xbf16>, vector<16x256xf32> -> vector<16x256xf32>
    %c0_7 = arith.constant 0 : index
    %c0_8 = arith.constant 0 : index
    %57 = vector.load %arg4[%c0_7, %c0_8] : memref<1x256xf32, #tpu.memory_space<vmem>>, vector<1x256xf32>
    %58 = vector.broadcast %57 : vector<1x256xf32> to vector<16x256xf32>
    %59 = arith.addf %56, %58 : vector<16x256xf32>
    %cst_9 = arith.constant 0.000000e+00 : f32
    %60 = vector.broadcast %cst_9 : f32 to vector<16x256xf32>
    %61 = arith.maximumf %59, %60 : vector<16x256xf32>
    %62 = arith.truncf %61 : vector<16x256xf32> to vector<16x256xbf16>
    %c0_10 = arith.constant 0 : index
    %c0_11 = arith.constant 0 : index
    %63 = vector.load %arg5[%c0_10, %c0_11] : memref<256x256xbf16, #tpu.memory_space<vmem>>, vector<256x256xbf16>
    %cst_12 = arith.constant dense<0.000000e+00> : vector<16x256xf32>
    %64 = tpu.matmul %62, %63, %cst_12 {dimension_numbers = #tpu.dot_dimension_numbers<[1], [0], [0], [1], [0, 0, 1, 1], [], []>} : vector<16x256xbf16>, vector<256x256xbf16>, vector<16x256xf32> -> vector<16x256xf32>
    %c0_13 = arith.constant 0 : index
    %c0_14 = arith.constant 0 : index
    %65 = vector.load %arg6[%c0_13, %c0_14] : memref<1x256xf32, #tpu.memory_space<vmem>>, vector<1x256xf32>
    %66 = vector.broadcast %65 : vector<1x256xf32> to vector<16x256xf32>
    %67 = arith.addf %64, %66 : vector<16x256xf32>
    %cst_15 = arith.constant 0.000000e+00 : f32
    %68 = vector.broadcast %cst_15 : f32 to vector<16x256xf32>
    %69 = arith.maximumf %67, %68 : vector<16x256xf32>
    %c0_16 = arith.constant 0 : index
    %c0_17 = arith.constant 0 : index
    %70 = vector.load %arg7[%c0_16, %c0_17] : memref<8x256xbf16, #tpu.memory_space<vmem>>, vector<8x256xbf16>
    %71 = arith.truncf %69 : vector<16x256xf32> to vector<16x256xbf16>
    %cst_18 = arith.constant dense<0.000000e+00> : vector<8x16xf32>
    %72 = tpu.matmul %70, %71, %cst_18 {dimension_numbers = #tpu.dot_dimension_numbers<[1], [1], [0], [0], [0, 0, 1, 0], [], []>} : vector<8x256xbf16>, vector<16x256xbf16>, vector<8x16xf32> -> vector<8x16xf32>
    %73 = vector.extract_strided_slice %72 {offsets = [0, 0], sizes = [1, 16], strides = [1, 1]} : vector<8x16xf32> to vector<1x16xf32>
    %c0_19 = arith.constant 0 : index
    %c0_20 = arith.constant 0 : index
    %74 = memref.load %arg8[%c0_19, %c0_20] : memref<1x1xf32, #tpu.memory_space<smem>>
    %75 = vector.broadcast %74 : f32 to vector<1x16xf32>
    %76 = arith.addf %73, %75 : vector<1x16xf32>
    %c0_21 = arith.constant 0 : index
    %c0_22 = arith.constant 0 : index
    %77 = vector.load %arg9[%c0_21, %c0_22] : memref<1x16xf32, #tpu.memory_space<vmem>>, vector<1x16xf32>
    tpu.vector_store %arg9[%c0_21, %c0_22], %76 {strides = array<i32>} : memref<1x16xf32, #tpu.memory_space<vmem>>, vector<1x16xf32>,
    return
  }
  func.func @transform_0(%arg0: i32) -> (i32, i32) {
    %c0_i32 = arith.constant 0 : i32
    %c0_i32_0 = arith.constant 0 : i32
    return %arg0, %c0_i32 : i32, i32
  }
  func.func @transform_1(%arg0: i32) -> (i32, i32) {
    %c0_i32 = arith.constant 0 : i32
    %c0_i32_0 = arith.constant 0 : i32
    %c0_i32_1 = arith.constant 0 : i32
    return %c0_i32, %c0_i32_0 : i32, i32
  }
  func.func @transform_2(%arg0: i32) -> (i32, i32) {
    %c0_i32 = arith.constant 0 : i32
    %c0_i32_0 = arith.constant 0 : i32
    %c0_i32_1 = arith.constant 0 : i32
    return %c0_i32, %c0_i32_0 : i32, i32
  }
  func.func @transform_3(%arg0: i32) -> (i32, i32) {
    %c0_i32 = arith.constant 0 : i32
    %c0_i32_0 = arith.constant 0 : i32
    %c0_i32_1 = arith.constant 0 : i32
    return %c0_i32, %c0_i32_0 : i32, i32
  }
  func.func @transform_4(%arg0: i32) -> (i32, i32) {
    %c0_i32 = arith.constant 0 : i32
    %c0_i32_0 = arith.constant 0 : i32
    %c0_i32_1 = arith.constant 0 : i32
    return %c0_i32, %c0_i32_0 : i32, i32
  }
  func.func @transform_5(%arg0: i32) -> (i32, i32) {
    %c0_i32 = arith.constant 0 : i32
    %c0_i32_0 = arith.constant 0 : i32
    %c0_i32_1 = arith.constant 0 : i32
    return %c0_i32, %c0_i32_0 : i32, i32
  }
  func.func @transform_6(%arg0: i32) -> (i32, i32) {
    %c0_i32 = arith.constant 0 : i32
    %c0_i32_0 = arith.constant 0 : i32
    %c0_i32_1 = arith.constant 0 : i32
    return %c0_i32, %c0_i32_0 : i32, i32
  }
  func.func @transform_7(%arg0: i32) -> (i32, i32) {
    %c0_i32 = arith.constant 0 : i32
    %c0_i32_0 = arith.constant 0 : i32
    %c0_i32_1 = arith.constant 0 : i32
    return %c0_i32, %c0_i32_0 : i32, i32
  }
  func.func @transform_8(%arg0: i32) -> (i32, i32) {
    %c0_i32 = arith.constant 0 : i32
    %c0_i32_0 = arith.constant 0 : i32
    return %c0_i32, %arg0 : i32, i32
  }
}

</mosaic_0001>

<llo_original>
// kernel: lame_model_forward.1
$region0: #{lame_model_forward.1}
  #allocation0 [shape = 'u32[]', space=smem, size = 0x4, offset = 0x4, fixed_abs, tag = 'smem constant byte address 0x4 - core index']
  #allocation1 [shape = 'u32[144,128]{1,0:T(1,128)}', space=vmem, size = 0x12000, scoped, tag = 'internal scratch']
  #allocation2 [shape = 'f32[1,1]{1,0:T(1,128)S(6)}', space=smem, size = 0x200, scoped, tag = 'scoped memory for lame_model_forward.1']
  %s0 = inlined_call_operand.vmem [shape: s32[16,8], index: 0, kind: input, shape index: {}]
  %s1 = inlined_call_operand.vmem [shape: bf16[128,384], index: 1, kind: input, shape index: {}]
  %s2 = inlined_call_operand.vmem [shape: bf16[384,256], index: 2, kind: input, shape index: {}]
  %s3 = inlined_call_operand.vmem [shape: f32[1,256], index: 3, kind: input, shape index: {}]
  %s4 = inlined_call_operand.vmem [shape: bf16[256,256], index: 4, kind: input, shape index: {}]
  %s5 = inlined_call_operand.vmem [shape: f32[1,256], index: 5, kind: input, shape index: {}]
  %s6 = inlined_call_operand.vmem [shape: bf16[8,256], index: 6, kind: input, shape index: {}]
  %s7 = inlined_call_operand.<no memory space> [shape: f32[1,1], index: 7, kind: input, shape index: {}]
  %s8 = inlined_call_operand.hbm [shape: f32[1,16], index: 8, kind: output, shape index: {}]
  %s9 = sld [smem:[#allocation0]]
  $region42: #{lame_model_forward.1} parent=0
    _
  %s11 = ssub.s32 1, %s9
  %s12 = scalar_select 0, %s11, %s9
  %13 = sst [smem:[#allocation2]] %s7
  $region1: #{lame_model_forward.1} parent=0
    #allocation3 [shape = 'u8[512]{0}', space=vmem, size = 0x400, scoped, tag = 'output window, operand 0, single buffered']
    #allocation4 [shape = 's32[1]{0}', space=sflag, size = 0x4, scoped, tag = 'scoped memory for lame_model_forward.1']
    %14 = vsyncpa [#allocation4], 0
    // Predicated region
    $region2: #{lame_model_forward.1} parent=1 // pred_check
      _
    $region3: #{lame_model_forward.1} parent=1 // pred_check_branch
      %16 = sbr.rel (0) target = $region5
    $region4: #{lame_model_forward.1} parent=1 // pred_region
      _
    $region5: #{lame_model_forward.1} parent=1 // pred_fallthru
      _
    // Predicated region
    $region6: #{lame_model_forward.1} parent=1 // pred_check
      _
    $region7: #{lame_model_forward.1} parent=1 // pred_check_branch
      %18 = sbr.rel (0) target = $region9
    $region8: #{lame_model_forward.1} parent=1 // pred_region
      _
    $region9: #{lame_model_forward.1} parent=1 // pred_fallthru
      _
    // Predicated region
    $region10: #{lame_model_forward.1} parent=1 // pred_check
      _
    $region11: #{lame_model_forward.1} parent=1 // pred_check_branch
      %20 = sbr.rel (0) target = $region13
    $region12: #{lame_model_forward.1} parent=1 // pred_region
      _
    $region13: #{lame_model_forward.1} parent=1 // pred_fallthru
      _
    // Predicated region
    $region14: #{lame_model_forward.1} parent=1 // pred_check
      _
    $region15: #{lame_model_forward.1} parent=1 // pred_check_branch
      %22 = sbr.rel (0) target = $region17
    $region16: #{lame_model_forward.1} parent=1 // pred_region
      _
    $region17: #{lame_model_forward.1} parent=1 // pred_fallthru
      _
    // Predicated region
    $region18: #{lame_model_forward.1} parent=1 // pred_check
      _
    $region19: #{lame_model_forward.1} parent=1 // pred_check_branch
      %24 = sbr.rel (0) target = $region21
    $region20: #{lame_model_forward.1} parent=1 // pred_region
      _
    $region21: #{lame_model_forward.1} parent=1 // pred_fallthru
      _
    // Predicated region
    $region22: #{lame_model_forward.1} parent=1 // pred_check
      _
    $region23: #{lame_model_forward.1} parent=1 // pred_check_branch
      %26 = sbr.rel (0) target = $region25
    $region24: #{lame_model_forward.1} parent=1 // pred_region
      _
    $region25: #{lame_model_forward.1} parent=1 // pred_fallthru
      _
    // Predicated region
    $region26: #{lame_model_forward.1} parent=1 // pred_check
      _
    $region27: #{lame_model_forward.1} parent=1 // pred_check_branch
      %28 = sbr.rel (0) target = $region29
    $region28: #{lame_model_forward.1} parent=1 // pred_region
      _
    $region29: #{lame_model_forward.1} parent=1 // pred_fallthru
      _
    // Predicated region
    $region30: #{lame_model_forward.1} parent=1 // pred_check
      _
    $region31: #{lame_model_forward.1} parent=1 // pred_check_branch
      %30 = sbr.rel (0) target = $region33
    $region32: #{lame_model_forward.1} parent=1 // pred_region
      _
    $region33: #{lame_model_forward.1} parent=1 // pred_fallthru
      _
    %v32 = vld [vmem:[%s0] sm:$0xff]
    %v33 = vld [vmem:[%s0 + $0x8] sm:$0xff]
    %v34 = vlaneseq
    %v35 = vand.u32 %v34, 127
    %36 = vset.pattern.permute.xlu0 0
    %37 = vperm.xlu0 %36, %v32
    %v38 = vpop.permute.xlu0 %37
    %39 = vset.pattern.permute.xlu0 0
    %40 = vperm.xlu0 %39, %v33
    %v41 = vpop.permute.xlu0 %40
    %vm42 = vcmp.eq.s32.totalorder %v38, %v35
    %vm43 = vcmp.eq.s32.totalorder %v41, %v35
    %v44 = vsel %vm42, 1, 0
    %v45 = vsel %vm43, 1, 0
    %v46 = vcvt.s32.f32 %v44
    %v47 = vcvt.s32.f32 %v45
    %v48 = vadd.f32 %v46, 0.0
    %v49 = vadd.f32 %v47, 0.0
    %50 = vset.pattern.permute.xlu0 1
    %51 = vperm.xlu0 %50, %v32
    %v52 = vpop.permute.xlu0 %51
    %53 = vset.pattern.permute.xlu0 1
    %54 = vperm.xlu0 %53, %v33
    %v55 = vpop.permute.xlu0 %54
    %vm56 = vcmp.eq.s32.totalorder %v52, %v35
    %vm57 = vcmp.eq.s32.totalorder %v55, %v35
    %v58 = vsel %vm56, 1, 0
    %v59 = vsel %vm57, 1, 0
    %v60 = vcvt.s32.f32 %v58
    %v61 = vcvt.s32.f32 %v59
    %v62 = vadd.f32 %v48, %v60
    %v63 = vadd.f32 %v49, %v61
    %64 = vset.pattern.permute.xlu0 2
    %65 = vperm.xlu0 %64, %v32
    %v66 = vpop.permute.xlu0 %65
    %67 = vset.pattern.permute.xlu0 2
    %68 = vperm.xlu0 %67, %v33
    %v69 = vpop.permute.xlu0 %68
    %vm70 = vcmp.eq.s32.totalorder %v66, %v35
    %vm71 = vcmp.eq.s32.totalorder %v69, %v35
    %v72 = vsel %vm70, 1, 0
    %v73 = vsel %vm71, 1, 0
    %v74 = vcvt.s32.f32 %v72
    %v75 = vcvt.s32.f32 %v73
    %v76 = vadd.f32 %v62, %v74
    %v77 = vadd.f32 %v63, %v75
    %78 = vset.pattern.permute.xlu0 3
    %79 = vperm.xlu0 %78, %v32
    %v80 = vpop.permute.xlu0 %79
    %81 = vset.pattern.permute.xlu0 3
    %82 = vperm.xlu0 %81, %v33
    %v83 = vpop.permute.xlu0 %82
    %vm84 = vcmp.eq.s32.totalorder %v80, %v35
    %vm85 = vcmp.eq.s32.totalorder %v83, %v35
    %v86 = vsel %vm84, 1, 0
    %v87 = vsel %vm85, 1, 0
    %v88 = vcvt.s32.f32 %v86
    %v89 = vcvt.s32.f32 %v87
    %v90 = vadd.f32 %v76, %v88
    %v91 = vadd.f32 %v77, %v89
    %92 = vset.pattern.permute.xlu0 4
    %93 = vperm.xlu0 %92, %v32
    %v94 = vpop.permute.xlu0 %93
    %95 = vset.pattern.permute.xlu0 4
    %96 = vperm.xlu0 %95, %v33
    %v97 = vpop.permute.xlu0 %96
    %vm98 = vcmp.eq.s32.totalorder %v94, %v35
    %vm99 = vcmp.eq.s32.totalorder %v97, %v35
    %v100 = vsel %vm98, 1, 0
    %v101 = vsel %vm99, 1, 0
    %v102 = vcvt.s32.f32 %v100
    %v103 = vcvt.s32.f32 %v101
    %v104 = vadd.f32 %v90, %v102
    %v105 = vadd.f32 %v91, %v103
    %106 = vset.pattern.permute.xlu0 5
    %107 = vperm.xlu0 %106, %v32
    %v108 = vpop.permute.xlu0 %107
    %109 = vset.pattern.permute.xlu0 5
    %110 = vperm.xlu0 %109, %v33
    %v111 = vpop.permute.xlu0 %110
    %vm112 = vcmp.eq.s32.totalorder %v108, %v35
    %vm113 = vcmp.eq.s32.totalorder %v111, %v35
    %v114 = vsel %vm112, 1, 0
    %v115 = vsel %vm113, 1, 0
    %v116 = vcvt.s32.f32 %v114
    %v117 = vcvt.s32.f32 %v115
    %v118 = vadd.f32 %v104, %v116
    %v119 = vadd.f32 %v105, %v117
    %120 = vset.pattern.permute.xlu0 6
    %121 = vperm.xlu0 %120, %v32
    %v122 = vpop.permute.xlu0 %121
    %123 = vset.pattern.permute.xlu0 6
    %124 = vperm.xlu0 %123, %v33
    %v125 = vpop.permute.xlu0 %124
    %vm126 = vcmp.eq.s32.totalorder %v122, %v35
    %vm127 = vcmp.eq.s32.totalorder %v125, %v35
    %v128 = vsel %vm126, 1, 0
    %v129 = vsel %vm127, 1, 0
    %v130 = vcvt.s32.f32 %v128
    %v131 = vcvt.s32.f32 %v129
    %v132 = vadd.f32 %v118, %v130
    %v133 = vadd.f32 %v119, %v131
    %134 = vset.pattern.permute.xlu0 7
    %135 = vperm.xlu0 %134, %v32
    %v136 = vpop.permute.xlu0 %135
    %137 = vset.pattern.permute.xlu0 7
    %138 = vperm.xlu0 %137, %v33
    %v139 = vpop.permute.xlu0 %138
    %vm140 = vcmp.eq.s32.totalorder %v136, %v35
    %vm141 = vcmp.eq.s32.totalorder %v139, %v35
    %v142 = vsel %vm140, 1, 0
    %v143 = vsel %vm141, 1, 0
    %v144 = vcvt.s32.f32 %v142
    %v145 = vcvt.s32.f32 %v143
    %v146 = vadd.f32 %v132, %v144
    %v147 = vadd.f32 %v133, %v145
    %v148 = vpack.c.bf16 %v147, %v146
    %v149 = vld [vmem:[%s1] sm:$0xff]
    %v150 = vld [vmem:[%s1 + $0x8] sm:$0xf]
    %v151 = vld [vmem:[%s1 + $0xc] sm:$0xff]
    %v152 = vld [vmem:[%s1 + $0x14] sm:$0xf]
    %v153 = vld [vmem:[%s1 + $0x18] sm:$0xff]
    %v154 = vld [vmem:[%s1 + $0x20] sm:$0xf]
    %v155 = vld [vmem:[%s1 + $0x24] sm:$0xff]
    %v156 = vld [vmem:[%s1 + $0x2c] sm:$0xf]
    %v157 = vld [vmem:[%s1 + $0x30] sm:$0xff]
    %v158 = vld [vmem:[%s1 + $0x38] sm:$0xf]
    %v159 = vld [vmem:[%s1 + $0x3c] sm:$0xff]
    %v160 = vld [vmem:[%s1 + $0x44] sm:$0xf]
    %v161 = vld [vmem:[%s1 + $0x48] sm:$0xff]
    %v162 = vld [vmem:[%s1 + $0x50] sm:$0xf]
    %v163 = vld [vmem:[%s1 + $0x54] sm:$0xff]
    %v164 = vld [vmem:[%s1 + $0x5c] sm:$0xf]
    %v165 = vld [vmem:[%s1 + $0x60] sm:$0xff]
    %v166 = vld [vmem:[%s1 + $0x68] sm:$0xf]
    %v167 = vld [vmem:[%s1 + $0x6c] sm:$0xff]
    %v168 = vld [vmem:[%s1 + $0x74] sm:$0xf]
    %v169 = vld [vmem:[%s1 + $0x78] sm:$0xff]
    %v170 = vld [vmem:[%s1 + $0x80] sm:$0xf]
    %v171 = vld [vmem:[%s1 + $0x84] sm:$0xff]
    %v172 = vld [vmem:[%s1 + $0x8c] sm:$0xf]
    %v173 = vld [vmem:[%s1 + $0x90] sm:$0xff]
    %v174 = vld [vmem:[%s1 + $0x98] sm:$0xf]
    %v175 = vld [vmem:[%s1 + $0x9c] sm:$0xff]
    %v176 = vld [vmem:[%s1 + $0xa4] sm:$0xf]
    %v177 = vld [vmem:[%s1 + $0xa8] sm:$0xff]
    %v178 = vld [vmem:[%s1 + $0xb0] sm:$0xf]
    %v179 = vld [vmem:[%s1 + $0xb4] sm:$0xff]
    %v180 = vld [vmem:[%s1 + $0xbc] sm:$0xf]
    %v213 = vunpack.c.l.b16 %v149
    %v214 = vunpack.c.h.b16 %v149
    %v215 = vunpack.c.l.b16 %v150
    %v216 = vunpack.c.l.b16 %v151
    %v217 = vunpack.c.h.b16 %v151
    %v218 = vunpack.c.l.b16 %v152
    %v219 = vunpack.c.l.b16 %v153
    %v220 = vunpack.c.h.b16 %v153
    %v221 = vunpack.c.l.b16 %v154
    %v222 = vunpack.c.l.b16 %v155
    %v223 = vunpack.c.h.b16 %v155
    %v224 = vunpack.c.l.b16 %v156
    %v225 = vunpack.c.l.b16 %v157
    %v226 = vunpack.c.h.b16 %v157
    %v227 = vunpack.c.l.b16 %v158
    %v228 = vunpack.c.l.b16 %v159
    %v229 = vunpack.c.h.b16 %v159
    %v230 = vunpack.c.l.b16 %v160
    %v231 = vunpack.c.l.b16 %v161
    %v232 = vunpack.c.h.b16 %v161
    %v233 = vunpack.c.l.b16 %v162
    %v234 = vunpack.c.l.b16 %v163
    %v235 = vunpack.c.h.b16 %v163
    %v236 = vunpack.c.l.b16 %v164
    %v237 = vunpack.c.l.b16 %v165
    %v238 = vunpack.c.h.b16 %v165
    %v239 = vunpack.c.l.b16 %v166
    %v240 = vunpack.c.l.b16 %v167
    %v241 = vunpack.c.h.b16 %v167
    %v242 = vunpack.c.l.b16 %v168
    %v243 = vunpack.c.l.b16 %v169
    %v244 = vunpack.c.h.b16 %v169
    %v245 = vunpack.c.l.b16 %v170
    %v246 = vunpack.c.l.b16 %v171
    %v247 = vunpack.c.h.b16 %v171
    %v248 = vunpack.c.l.b16 %v172
    %v249 = vunpack.c.l.b16 %v173
    %v250 = vunpack.c.h.b16 %v173
    %v251 = vunpack.c.l.b16 %v174
    %v252 = vunpack.c.l.b16 %v175
    %v253 = vunpack.c.h.b16 %v175
    %v254 = vunpack.c.l.b16 %v176
    %v255 = vunpack.c.l.b16 %v177
    %v256 = vunpack.c.h.b16 %v177
    %v257 = vunpack.c.l.b16 %v178
    %v258 = vunpack.c.l.b16 %v179
    %v259 = vunpack.c.h.b16 %v179
    %v260 = vunpack.c.l.b16 %v180
    %v261 = vpack.c.b16 %v216, %v213
    %v262 = vpack.c.b16 %v217, %v214
    %v263 = vpack.c.b16 %v218, %v215
    %v264 = vpack.c.b16 %v222, %v219
    %v265 = vpack.c.b16 %v223, %v220
    %v266 = vpack.c.b16 %v224, %v221
    %v267 = vpack.c.b16 %v228, %v225
    %v268 = vpack.c.b16 %v229, %v226
    %v269 = vpack.c.b16 %v230, %v227
    %v270 = vpack.c.b16 %v234, %v231
    %v271 = vpack.c.b16 %v235, %v232
    %v272 = vpack.c.b16 %v236, %v233
    %v273 = vpack.c.b16 %v240, %v237
    %v274 = vpack.c.b16 %v241, %v238
    %v275 = vpack.c.b16 %v242, %v239
    %v276 = vpack.c.b16 %v246, %v243
    %v277 = vpack.c.b16 %v247, %v244
    %v278 = vpack.c.b16 %v248, %v245
    %v279 = vpack.c.b16 %v252, %v249
    %v280 = vpack.c.b16 %v253, %v250
    %v281 = vpack.c.b16 %v254, %v251
    %v282 = vpack.c.b16 %v258, %v255
    %v283 = vpack.c.b16 %v259, %v256
    %v284 = vpack.c.b16 %v260, %v257
    %309 = vmatprep.subr.bf16.mxu0 %v262
    %310 = vmatpush1.bf16.msra.mxu0 %v261
    %311 = vmatprep.subr.bf16.mxu0 %v265
    %312 = vmatpush1.bf16.msra.mxu0 %v264
    %313 = vmatprep.subr.bf16.mxu0 %v268
    %314 = vmatpush1.bf16.msra.mxu0 %v267
    %315 = vmatprep.subr.bf16.mxu0 %v271
    %316 = vmatpush1.bf16.msra.mxu0 %v270
    %317 = vmatprep.subr.bf16.mxu0 %v274
    %318 = vmatpush1.bf16.msra.mxu0 %v273
    %319 = vmatprep.subr.bf16.mxu0 %v277
    %320 = vmatpush1.bf16.msra.mxu0 %v276
    %321 = vmatprep.subr.bf16.mxu0 %v280
    %322 = vmatpush1.bf16.msra.mxu0 %v279
    %323 = vmatprep.subr.bf16.mxu0 %v283
    %324 = vmatpush1.bf16.msra.mxu0 %v282
    %325 = vmatprep.subr.bf16.mxu0 0
    %326 = vmatpush1.bf16.msra.mxu0 0
    %327 = vmatprep.subr.bf16.mxu0 0
    %328 = vmatpush1.bf16.msra.mxu0 0
    %329 = vmatprep.subr.bf16.mxu0 0
    %330 = vmatpush1.bf16.msra.mxu0 0
    %331 = vmatprep.subr.bf16.mxu0 0
    %332 = vmatpush1.bf16.msra.mxu0 0
    %333 = vmatprep.subr.bf16.mxu0 0
    %334 = vmatpush1.bf16.msra.mxu0 0
    %335 = vmatprep.subr.bf16.mxu0 0
    %336 = vmatpush1.bf16.msra.mxu0 0
    %337 = vmatprep.subr.bf16.mxu0 0
    %338 = vmatpush1.bf16.msra.mxu0 0
    %339 = vmatprep.subr.bf16.mxu0 0
    %340 = vmatpush1.bf16.msra.mxu0 0
    %341 = vmatprep.mubr.bf16.mxu0 0
    %342 = vmatmul.mubr.bf16.gmra.mrb[0].mxu0 %v148
    %v343 = vpop.f32.mrb[0].mxu0
    %v344 = vadd.f32 0.0, %v343
    %v345 = vpop.f32.mrb[0].mxu0
    %v346 = vadd.f32 0.0, %v345
    %v347 = vpop.f32.mrb[0].mxu0
    %v348 = vadd.f32 0.0, %v347
    %v349 = vpop.f32.mrb[0].mxu0
    %v350 = vadd.f32 0.0, %v349
    %351 = vdwg.mxu0
    %352 = vmatprep.subr.bf16.mxu0 0
    %353 = vmatpush1.bf16.msra.mxu0 %v263
    %354 = vmatprep.subr.bf16.mxu0 0
    %355 = vmatpush1.bf16.msra.mxu0 %v266
    %356 = vmatprep.subr.bf16.mxu0 0
    %357 = vmatpush1.bf16.msra.mxu0 %v269
    %358 = vmatprep.subr.bf16.mxu0 0
    %359 = vmatpush1.bf16.msra.mxu0 %v272
    %360 = vmatprep.subr.bf16.mxu0 0
    %361 = vmatpush1.bf16.msra.mxu0 %v275
    %362 = vmatprep.subr.bf16.mxu0 0
    %363 = vmatpush1.bf16.msra.mxu0 %v278
    %364 = vmatprep.subr.bf16.mxu0 0
    %365 = vmatpush1.bf16.msra.mxu0 %v281
    %366 = vmatprep.subr.bf16.mxu0 0
    %367 = vmatpush1.bf16.msra.mxu0 %v284
    %368 = vmatprep.subr.bf16.mxu0 0
    %369 = vmatpush1.bf16.msra.mxu0 0
    %370 = vmatprep.subr.bf16.mxu0 0
    %371 = vmatpush1.bf16.msra.mxu0 0
    %372 = vmatprep.subr.bf16.mxu0 0
    %373 = vmatpush1.bf16.msra.mxu0 0
    %374 = vmatprep.subr.bf16.mxu0 0
    %375 = vmatpush1.bf16.msra.mxu0 0
    %376 = vmatprep.subr.bf16.mxu0 0
    %377 = vmatpush1.bf16.msra.mxu0 0
    %378 = vmatprep.subr.bf16.mxu0 0
    %379 = vmatpush1.bf16.msra.mxu0 0
    %380 = vmatprep.subr.bf16.mxu0 0
    %381 = vmatpush1.bf16.msra.mxu0 0
    %382 = vmatprep.subr.bf16.mxu0 0
    %383 = vmatpush1.bf16.msra.mxu0 0
    %384 = vmatprep.mubr.bf16.mxu0 0
    %385 = vmatmul.mubr.bf16.gmra.mrb[0].mxu0 %v148
    %v386 = vpop.f32.mrb[0].mxu0
    %v387 = vadd.f32 0.0, %v386
    %v388 = vpop.f32.mrb[0].mxu0
    %v389 = vpop.f32.mrb[0].mxu0
    %v390 = vadd.f32 0.0, %v389
    %v391 = vpop.f32.mrb[0].mxu0
    %392 = vdwg.mxu0
    %v393 = vpack.c.bf16 %v348, %v344
    %v394 = vpack.c.bf16 %v350, %v346
    %v395 = vpack.c.bf16 %v390, %v387
    %v396 = vld [vmem:[%s2] sm:$0xff]
    %v397 = vld [vmem:[%s2 + $0x8] sm:$0xff]
    %v398 = vld [vmem:[%s2 + $0x10] sm:$0xff]
    %v399 = vld [vmem:[%s2 + $0x18] sm:$0xff]
    %v400 = vld [vmem:[%s2 + $0x20] sm:$0xff]
    %v401 = vld [vmem:[%s2 + $0x28] sm:$0xff]
    %v402 = vld [vmem:[%s2 + $0x30] sm:$0xff]
    %v403 = vld [vmem:[%s2 + $0x38] sm:$0xff]
    %v404 = vld [vmem:[%s2 + $0x40] sm:$0xff]
    %v405 = vld [vmem:[%s2 + $0x48] sm:$0xff]
    %v406 = vld [vmem:[%s2 + $0x50] sm:$0xff]
    %v407 = vld [vmem:[%s2 + $0x58] sm:$0xff]
    %v408 = vld [vmem:[%s2 + $0x60] sm:$0xff]
    %v409 = vld [vmem:[%s2 + $0x68] sm:$0xff]
    %v410 = vld [vmem:[%s2 + $0x70] sm:$0xff]
    %v411 = vld [vmem:[%s2 + $0x78] sm:$0xff]
    %v412 = vld [vmem:[%s2 + $0x80] sm:$0xff]
    %v413 = vld [vmem:[%s2 + $0x88] sm:$0xff]
    %v414 = vld [vmem:[%s2 + $0x90] sm:$0xff]
    %v415 = vld [vmem:[%s2 + $0x98] sm:$0xff]
    %v416 = vld [vmem:[%s2 + $0xa0] sm:$0xff]
    %v417 = vld [vmem:[%s2 + $0xa8] sm:$0xff]
    %v418 = vld [vmem:[%s2 + $0xb0] sm:$0xff]
    %v419 = vld [vmem:[%s2 + $0xb8] sm:$0xff]
    %v420 = vld [vmem:[%s2 + $0xc0] sm:$0xff]
    %v421 = vld [vmem:[%s2 + $0xc8] sm:$0xff]
    %v422 = vld [vmem:[%s2 + $0xd0] sm:$0xff]
    %v423 = vld [vmem:[%s2 + $0xd8] sm:$0xff]
    %v424 = vld [vmem:[%s2 + $0xe0] sm:$0xff]
    %v425 = vld [vmem:[%s2 + $0xe8] sm:$0xff]
    %v426 = vld [vmem:[%s2 + $0xf0] sm:$0xff]
    %v427 = vld [vmem:[%s2 + $0xf8] sm:$0xff]
    %v428 = vld [vmem:[%s2 + $0x100] sm:$0xff]
    %v429 = vld [vmem:[%s2 + $0x108] sm:$0xff]
    %v430 = vld [vmem:[%s2 + $0x110] sm:$0xff]
    %v431 = vld [vmem:[%s2 + $0x118] sm:$0xff]
    %v432 = vld [vmem:[%s2 + $0x120] sm:$0xff]
    %v433 = vld [vmem:[%s2 + $0x128] sm:$0xff]
    %v434 = vld [vmem:[%s2 + $0x130] sm:$0xff]
    %v435 = vld [vmem:[%s2 + $0x138] sm:$0xff]
    %v436 = vld [vmem:[%s2 + $0x140] sm:$0xff]
    %v437 = vld [vmem:[%s2 + $0x148] sm:$0xff]
    %v438 = vld [vmem:[%s2 + $0x150] sm:$0xff]
    %v439 = vld [vmem:[%s2 + $0x158] sm:$0xff]
    %v440 = vld [vmem:[%s2 + $0x160] sm:$0xff]
    %v441 = vld [vmem:[%s2 + $0x168] sm:$0xff]
    %v442 = vld [vmem:[%s2 + $0x170] sm:$0xff]
    %v443 = vld [vmem:[%s2 + $0x178] sm:$0xff]
    %v444 = vld [vmem:[%s3] sm:$0x3]
    %v446 = vlaneseq
    %v447 = vshrl.u32 %v446, 7
    %v448 = vsub.s32 0, %v447
    %v449 = vrot.slane %v444, %v448
    %v450 = vlaneseq
    %v451 = vshrl.u32 %v450, 7
    %v452 = vsub.s32 1, %v451
    %v453 = vrot.slane %v444, %v452
    %v504 = vunpack.c.l.b16 %v396
    %v505 = vunpack.c.h.b16 %v396
    %v506 = vunpack.c.l.b16 %v397
    %v507 = vunpack.c.h.b16 %v397
    %v508 = vunpack.c.l.b16 %v398
    %v509 = vunpack.c.h.b16 %v398
    %v510 = vunpack.c.l.b16 %v399
    %v511 = vunpack.c.h.b16 %v399
    %v512 = vunpack.c.l.b16 %v400
    %v513 = vunpack.c.h.b16 %v400
    %v514 = vunpack.c.l.b16 %v401
    %v515 = vunpack.c.h.b16 %v401
    %v516 = vunpack.c.l.b16 %v402
    %v517 = vunpack.c.h.b16 %v402
    %v518 = vunpack.c.l.b16 %v403
    %v519 = vunpack.c.h.b16 %v403
    %v520 = vunpack.c.l.b16 %v404
    %v521 = vunpack.c.h.b16 %v404
    %v522 = vunpack.c.l.b16 %v405
    %v523 = vunpack.c.h.b16 %v405
    %v524 = vunpack.c.l.b16 %v406
    %v525 = vunpack.c.h.b16 %v406
    %v526 = vunpack.c.l.b16 %v407
    %v527 = vunpack.c.h.b16 %v407
    %v528 = vunpack.c.l.b16 %v408
    %v529 = vunpack.c.h.b16 %v408
    %v530 = vunpack.c.l.b16 %v409
    %v531 = vunpack.c.h.b16 %v409
    %v532 = vunpack.c.l.b16 %v410
    %v533 = vunpack.c.h.b16 %v410
    %v534 = vunpack.c.l.b16 %v411
    %v535 = vunpack.c.h.b16 %v411
    %v536 = vunpack.c.l.b16 %v412
    %v537 = vunpack.c.h.b16 %v412
    %v538 = vunpack.c.l.b16 %v413
    %v539 = vunpack.c.h.b16 %v413
    %v540 = vunpack.c.l.b16 %v414
    %v541 = vunpack.c.h.b16 %v414
    %v542 = vunpack.c.l.b16 %v415
    %v543 = vunpack.c.h.b16 %v415
    %v544 = vunpack.c.l.b16 %v416
    %v545 = vunpack.c.h.b16 %v416
    %v546 = vunpack.c.l.b16 %v417
    %v547 = vunpack.c.h.b16 %v417
    %v548 = vunpack.c.l.b16 %v418
    %v549 = vunpack.c.h.b16 %v418
    %v550 = vunpack.c.l.b16 %v419
    %v551 = vunpack.c.h.b16 %v419
    %v552 = vunpack.c.l.b16 %v420
    %v553 = vunpack.c.h.b16 %v420
    %v554 = vunpack.c.l.b16 %v421
    %v555 = vunpack.c.h.b16 %v421
    %v556 = vunpack.c.l.b16 %v422
    %v557 = vunpack.c.h.b16 %v422
    %v558 = vunpack.c.l.b16 %v423
    %v559 = vunpack.c.h.b16 %v423
    %v560 = vunpack.c.l.b16 %v424
    %v561 = vunpack.c.h.b16 %v424
    %v562 = vunpack.c.l.b16 %v425
    %v563 = vunpack.c.h.b16 %v425
    %v564 = vunpack.c.l.b16 %v426
    %v565 = vunpack.c.h.b16 %v426
    %v566 = vunpack.c.l.b16 %v427
    %v567 = vunpack.c.h.b16 %v427
    %v568 = vunpack.c.l.b16 %v428
    %v569 = vunpack.c.h.b16 %v428
    %v570 = vunpack.c.l.b16 %v429
    %v571 = vunpack.c.h.b16 %v429
    %v572 = vunpack.c.l.b16 %v430
    %v573 = vunpack.c.h.b16 %v430
    %v574 = vunpack.c.l.b16 %v431
    %v575 = vunpack.c.h.b16 %v431
    %v576 = vunpack.c.l.b16 %v432
    %v577 = vunpack.c.h.b16 %v432
    %v578 = vunpack.c.l.b16 %v433
    %v579 = vunpack.c.h.b16 %v433
    %v580 = vunpack.c.l.b16 %v434
    %v581 = vunpack.c.h.b16 %v434
    %v582 = vunpack.c.l.b16 %v435
    %v583 = vunpack.c.h.b16 %v435
    %v584 = vunpack.c.l.b16 %v436
    %v585 = vunpack.c.h.b16 %v436
    %v586 = vunpack.c.l.b16 %v437
    %v587 = vunpack.c.h.b16 %v437
    %v588 = vunpack.c.l.b16 %v438
    %v589 = vunpack.c.h.b16 %v438
    %v590 = vunpack.c.l.b16 %v439
    %v591 = vunpack.c.h.b16 %v439
    %v592 = vunpack.c.l.b16 %v440
    %v593 = vunpack.c.h.b16 %v440
    %v594 = vunpack.c.l.b16 %v441
    %v595 = vunpack.c.h.b16 %v441
    %v596 = vunpack.c.l.b16 %v442
    %v597 = vunpack.c.h.b16 %v442
    %v598 = vunpack.c.l.b16 %v443
    %v599 = vunpack.c.h.b16 %v443
    %v600 = vpack.c.b16 %v506, %v504
    %v601 = vpack.c.b16 %v507, %v505
    %v602 = vpack.c.b16 %v510, %v508
    %v603 = vpack.c.b16 %v511, %v509
    %v604 = vpack.c.b16 %v514, %v512
    %v605 = vpack.c.b16 %v515, %v513
    %v606 = vpack.c.b16 %v518, %v516
    %v607 = vpack.c.b16 %v519, %v517
    %v608 = vpack.c.b16 %v522, %v520
    %v609 = vpack.c.b16 %v523, %v521
    %v610 = vpack.c.b16 %v526, %v524
    %v611 = vpack.c.b16 %v527, %v525
    %v612 = vpack.c.b16 %v530, %v528
    %v613 = vpack.c.b16 %v531, %v529
    %v614 = vpack.c.b16 %v534, %v532
    %v615 = vpack.c.b16 %v535, %v533
    %v616 = vpack.c.b16 %v538, %v536
    %v617 = vpack.c.b16 %v539, %v537
    %v618 = vpack.c.b16 %v542, %v540
    %v619 = vpack.c.b16 %v543, %v541
    %v620 = vpack.c.b16 %v546, %v544
    %v621 = vpack.c.b16 %v547, %v545
    %v622 = vpack.c.b16 %v550, %v548
    %v623 = vpack.c.b16 %v551, %v549
    %v624 = vpack.c.b16 %v554, %v552
    %v625 = vpack.c.b16 %v555, %v553
    %v626 = vpack.c.b16 %v558, %v556
    %v627 = vpack.c.b16 %v559, %v557
    %v628 = vpack.c.b16 %v562, %v560
    %v629 = vpack.c.b16 %v563, %v561
    %v630 = vpack.c.b16 %v566, %v564
    %v631 = vpack.c.b16 %v567, %v565
    %v632 = vpack.c.b16 %v570, %v568
    %v633 = vpack.c.b16 %v571, %v569
    %v634 = vpack.c.b16 %v574, %v572
    %v635 = vpack.c.b16 %v575, %v573
    %v636 = vpack.c.b16 %v578, %v576
    %v637 = vpack.c.b16 %v579, %v577
    %v638 = vpack.c.b16 %v582, %v580
    %v639 = vpack.c.b16 %v583, %v581
    %v640 = vpack.c.b16 %v586, %v584
    %v641 = vpack.c.b16 %v587, %v585
    %v642 = vpack.c.b16 %v590, %v588
    %v643 = vpack.c.b16 %v591, %v589
    %v644 = vpack.c.b16 %v594, %v592
    %v645 = vpack.c.b16 %v595, %v593
    %v646 = vpack.c.b16 %v598, %v596
    %v647 = vpack.c.b16 %v599, %v597
    %696 = vmatprep.subr.bf16.mxu0 %v601
    %697 = vmatpush1.bf16.msra.mxu0 %v600
    %698 = vmatprep.subr.bf16.mxu0 %v603
    %699 = vmatpush1.bf16.msra.mxu0 %v602
    %700 = vmatprep.subr.bf16.mxu0 %v605
    %701 = vmatpush1.bf16.msra.mxu0 %v604
    %702 = vmatprep.subr.bf16.mxu0 %v607
    %703 = vmatpush1.bf16.msra.mxu0 %v606
    %704 = vmatprep.subr.bf16.mxu0 %v609
    %705 = vmatpush1.bf16.msra.mxu0 %v608
    %706 = vmatprep.subr.bf16.mxu0 %v611
    %707 = vmatpush1.bf16.msra.mxu0 %v610
    %708 = vmatprep.subr.bf16.mxu0 %v613
    %709 = vmatpush1.bf16.msra.mxu0 %v612
    %710 = vmatprep.subr.bf16.mxu0 %v615
    %711 = vmatpush1.bf16.msra.mxu0 %v614
    %712 = vmatprep.subr.bf16.mxu0 %v617
    %713 = vmatpush1.bf16.msra.mxu0 %v616
    %714 = vmatprep.subr.bf16.mxu0 %v619
    %715 = vmatpush1.bf16.msra.mxu0 %v618
    %716 = vmatprep.subr.bf16.mxu0 %v621
    %717 = vmatpush1.bf16.msra.mxu0 %v620
    %718 = vmatprep.subr.bf16.mxu0 %v623
    %719 = vmatpush1.bf16.msra.mxu0 %v622
    %720 = vmatprep.subr.bf16.mxu0 %v625
    %721 = vmatpush1.bf16.msra.mxu0 %v624
    %722 = vmatprep.subr.bf16.mxu0 %v627
    %723 = vmatpush1.bf16.msra.mxu0 %v626
    %724 = vmatprep.subr.bf16.mxu0 %v629
    %725 = vmatpush1.bf16.msra.mxu0 %v628
    %726 = vmatprep.subr.bf16.mxu0 %v631
    %727 = vmatpush1.bf16.msra.mxu0 %v630
    %728 = vmatprep.mubr.bf16.mxu0 %v394
    %729 = vmatmul.mubr.bf16.gmra.mrb[0].mxu0 %v393
    %v730 = vpop.f32.mrb[0].mxu0
    %v731 = vadd.f32 %v449, %v730
    %v732 = vpop.f32.mrb[0].mxu0
    %v733 = vadd.f32 %v453, %v732
    %v734 = vpop.f32.mrb[0].mxu0
    %v735 = vadd.f32 %v449, %v734
    %v736 = vpop.f32.mrb[0].mxu0
    %v737 = vadd.f32 %v453, %v736
    %738 = vdwg.mxu0
    %739 = vmatprep.subr.bf16.mxu0 %v633
    %740 = vmatpush1.bf16.msra.mxu0 %v632
    %741 = vmatprep.subr.bf16.mxu0 %v635
    %742 = vmatpush1.bf16.msra.mxu0 %v634
    %743 = vmatprep.subr.bf16.mxu0 %v637
    %744 = vmatpush1.bf16.msra.mxu0 %v636
    %745 = vmatprep.subr.bf16.mxu0 %v639
    %746 = vmatpush1.bf16.msra.mxu0 %v638
    %747 = vmatprep.subr.bf16.mxu0 %v641
    %748 = vmatpush1.bf16.msra.mxu0 %v640
    %749 = vmatprep.subr.bf16.mxu0 %v643
    %750 = vmatpush1.bf16.msra.mxu0 %v642
    %751 = vmatprep.subr.bf16.mxu0 %v645
    %752 = vmatpush1.bf16.msra.mxu0 %v644
    %753 = vmatprep.subr.bf16.mxu0 %v647
    %754 = vmatpush1.bf16.msra.mxu0 %v646
    %755 = vmatprep.subr.bf16.mxu0 0
    %756 = vmatpush1.bf16.msra.mxu0 0
    %757 = vmatprep.subr.bf16.mxu0 0
    %758 = vmatpush1.bf16.msra.mxu0 0
    %759 = vmatprep.subr.bf16.mxu0 0
    %760 = vmatpush1.bf16.msra.mxu0 0
    %761 = vmatprep.subr.bf16.mxu0 0
    %762 = vmatpush1.bf16.msra.mxu0 0
    %763 = vmatprep.subr.bf16.mxu0 0
    %764 = vmatpush1.bf16.msra.mxu0 0
    %765 = vmatprep.subr.bf16.mxu0 0
    %766 = vmatpush1.bf16.msra.mxu0 0
    %767 = vmatprep.subr.bf16.mxu0 0
    %768 = vmatpush1.bf16.msra.mxu0 0
    %769 = vmatprep.subr.bf16.mxu0 0
    %770 = vmatpush1.bf16.msra.mxu0 0
    %771 = vmatprep.mubr.bf16.mxu0 0
    %772 = vmatmul.mubr.bf16.gmra.mrb[0].mxu0 %v395
    %v773 = vpop.f32.mrb[0].mxu0
    %v774 = vadd.f32 %v731, %v773
    %v775 = vpop.f32.mrb[0].mxu0
    %v776 = vadd.f32 %v733, %v775
    %v777 = vpop.f32.mrb[0].mxu0
    %v778 = vadd.f32 %v735, %v777
    %v779 = vpop.f32.mrb[0].mxu0
    %v780 = vadd.f32 %v737, %v779
    %781 = vdwg.mxu0
    %v782 = vmax.f32 %v774, 0.0
    %v783 = vmax.f32 %v776, 0.0
    %v784 = vmax.f32 %v778, 0.0
    %v785 = vmax.f32 %v780, 0.0
    %v786 = vpack.c.bf16 %v784, %v782
    %v787 = vpack.c.bf16 %v785, %v783
    %v788 = vld [vmem:[%s4] sm:$0xff]
    %v789 = vld [vmem:[%s4 + $0x8] sm:$0xff]
    %v790 = vld [vmem:[%s4 + $0x10] sm:$0xff]
    %v791 = vld [vmem:[%s4 + $0x18] sm:$0xff]
    %v792 = vld [vmem:[%s4 + $0x20] sm:$0xff]
    %v793 = vld [vmem:[%s4 + $0x28] sm:$0xff]
    %v794 = vld [vmem:[%s4 + $0x30] sm:$0xff]
    %v795 = vld [vmem:[%s4 + $0x38] sm:$0xff]
    %v796 = vld [vmem:[%s4 + $0x40] sm:$0xff]
    %v797 = vld [vmem:[%s4 + $0x48] sm:$0xff]
    %v798 = vld [vmem:[%s4 + $0x50] sm:$0xff]
    %v799 = vld [vmem:[%s4 + $0x58] sm:$0xff]
    %v800 = vld [vmem:[%s4 + $0x60] sm:$0xff]
    %v801 = vld [vmem:[%s4 + $0x68] sm:$0xff]
    %v802 = vld [vmem:[%s4 + $0x70] sm:$0xff]
    %v803 = vld [vmem:[%s4 + $0x78] sm:$0xff]
    %v804 = vld [vmem:[%s4 + $0x80] sm:$0xff]
    %v805 = vld [vmem:[%s4 + $0x88] sm:$0xff]
    %v806 = vld [vmem:[%s4 + $0x90] sm:$0xff]
    %v807 = vld [vmem:[%s4 + $0x98] sm:$0xff]
    %v808 = vld [vmem:[%s4 + $0xa0] sm:$0xff]
    %v809 = vld [vmem:[%s4 + $0xa8] sm:$0xff]
    %v810 = vld [vmem:[%s4 + $0xb0] sm:$0xff]
    %v811 = vld [vmem:[%s4 + $0xb8] sm:$0xff]
    %v812 = vld [vmem:[%s4 + $0xc0] sm:$0xff]
    %v813 = vld [vmem:[%s4 + $0xc8] sm:$0xff]
    %v814 = vld [vmem:[%s4 + $0xd0] sm:$0xff]
    %v815 = vld [vmem:[%s4 + $0xd8] sm:$0xff]
    %v816 = vld [vmem:[%s4 + $0xe0] sm:$0xff]
    %v817 = vld [vmem:[%s4 + $0xe8] sm:$0xff]
    %v818 = vld [vmem:[%s4 + $0xf0] sm:$0xff]
    %v819 = vld [vmem:[%s4 + $0xf8] sm:$0xff]
    %v820 = vld [vmem:[%s5] sm:$0x3]
    %v822 = vlaneseq
    %v823 = vshrl.u32 %v822, 7
    %v824 = vsub.s32 0, %v823
    %v825 = vrot.slane %v820, %v824
    %v826 = vlaneseq
    %v827 = vshrl.u32 %v826, 7
    %v828 = vsub.s32 1, %v827
    %v829 = vrot.slane %v820, %v828
    %v864 = vunpack.c.l.b16 %v788
    %v865 = vunpack.c.h.b16 %v788
    %v866 = vunpack.c.l.b16 %v789
    %v867 = vunpack.c.h.b16 %v789
    %v868 = vunpack.c.l.b16 %v790
    %v869 = vunpack.c.h.b16 %v790
    %v870 = vunpack.c.l.b16 %v791
    %v871 = vunpack.c.h.b16 %v791
    %v872 = vunpack.c.l.b16 %v792
    %v873 = vunpack.c.h.b16 %v792
    %v874 = vunpack.c.l.b16 %v793
    %v875 = vunpack.c.h.b16 %v793
    %v876 = vunpack.c.l.b16 %v794
    %v877 = vunpack.c.h.b16 %v794
    %v878 = vunpack.c.l.b16 %v795
    %v879 = vunpack.c.h.b16 %v795
    %v880 = vunpack.c.l.b16 %v796
    %v881 = vunpack.c.h.b16 %v796
    %v882 = vunpack.c.l.b16 %v797
    %v883 = vunpack.c.h.b16 %v797
    %v884 = vunpack.c.l.b16 %v798
    %v885 = vunpack.c.h.b16 %v798
    %v886 = vunpack.c.l.b16 %v799
    %v887 = vunpack.c.h.b16 %v799
    %v888 = vunpack.c.l.b16 %v800
    %v889 = vunpack.c.h.b16 %v800
    %v890 = vunpack.c.l.b16 %v801
    %v891 = vunpack.c.h.b16 %v801
    %v892 = vunpack.c.l.b16 %v802
    %v893 = vunpack.c.h.b16 %v802
    %v894 = vunpack.c.l.b16 %v803
    %v895 = vunpack.c.h.b16 %v803
    %v896 = vunpack.c.l.b16 %v804
    %v897 = vunpack.c.h.b16 %v804
    %v898 = vunpack.c.l.b16 %v805
    %v899 = vunpack.c.h.b16 %v805
    %v900 = vunpack.c.l.b16 %v806
    %v901 = vunpack.c.h.b16 %v806
    %v902 = vunpack.c.l.b16 %v807
    %v903 = vunpack.c.h.b16 %v807
    %v904 = vunpack.c.l.b16 %v808
    %v905 = vunpack.c.h.b16 %v808
    %v906 = vunpack.c.l.b16 %v809
    %v907 = vunpack.c.h.b16 %v809
    %v908 = vunpack.c.l.b16 %v810
    %v909 = vunpack.c.h.b16 %v810
    %v910 = vunpack.c.l.b16 %v811
    %v911 = vunpack.c.h.b16 %v811
    %v912 = vunpack.c.l.b16 %v812
    %v913 = vunpack.c.h.b16 %v812
    %v914 = vunpack.c.l.b16 %v813
    %v915 = vunpack.c.h.b16 %v813
    %v916 = vunpack.c.l.b16 %v814
    %v917 = vunpack.c.h.b16 %v814
    %v918 = vunpack.c.l.b16 %v815
    %v919 = vunpack.c.h.b16 %v815
    %v920 = vunpack.c.l.b16 %v816
    %v921 = vunpack.c.h.b16 %v816
    %v922 = vunpack.c.l.b16 %v817
    %v923 = vunpack.c.h.b16 %v817
    %v924 = vunpack.c.l.b16 %v818
    %v925 = vunpack.c.h.b16 %v818
    %v926 = vunpack.c.l.b16 %v819
    %v927 = vunpack.c.h.b16 %v819
    %v928 = vpack.c.b16 %v866, %v864
    %v929 = vpack.c.b16 %v867, %v865
    %v930 = vpack.c.b16 %v870, %v868
    %v931 = vpack.c.b16 %v871, %v869
    %v932 = vpack.c.b16 %v874, %v872
    %v933 = vpack.c.b16 %v875, %v873
    %v934 = vpack.c.b16 %v878, %v876
    %v935 = vpack.c.b16 %v879, %v877
    %v936 = vpack.c.b16 %v882, %v880
    %v937 = vpack.c.b16 %v883, %v881
    %v938 = vpack.c.b16 %v886, %v884
    %v939 = vpack.c.b16 %v887, %v885
    %v940 = vpack.c.b16 %v890, %v888
    %v941 = vpack.c.b16 %v891, %v889
    %v942 = vpack.c.b16 %v894, %v892
    %v943 = vpack.c.b16 %v895, %v893
    %v944 = vpack.c.b16 %v898, %v896
    %v945 = vpack.c.b16 %v899, %v897
    %v946 = vpack.c.b16 %v902, %v900
    %v947 = vpack.c.b16 %v903, %v901
    %v948 = vpack.c.b16 %v906, %v904
    %v949 = vpack.c.b16 %v907, %v905
    %v950 = vpack.c.b16 %v910, %v908
    %v951 = vpack.c.b16 %v911, %v909
    %v952 = vpack.c.b16 %v914, %v912
    %v953 = vpack.c.b16 %v915, %v913
    %v954 = vpack.c.b16 %v918, %v916
    %v955 = vpack.c.b16 %v919, %v917
    %v956 = vpack.c.b16 %v922, %v920
    %v957 = vpack.c.b16 %v923, %v921
    %v958 = vpack.c.b16 %v926, %v924
    %v959 = vpack.c.b16 %v927, %v925
    %992 = vmatprep.subr.bf16.mxu0 %v929
    %993 = vmatpush1.bf16.msra.mxu0 %v928
    %994 = vmatprep.subr.bf16.mxu0 %v931
    %995 = vmatpush1.bf16.msra.mxu0 %v930
    %996 = vmatprep.subr.bf16.mxu0 %v933
    %997 = vmatpush1.bf16.msra.mxu0 %v932
    %998 = vmatprep.subr.bf16.mxu0 %v935
    %999 = vmatpush1.bf16.msra.mxu0 %v934
    %1000 = vmatprep.subr.bf16.mxu0 %v937
    %1001 = vmatpush1.bf16.msra.mxu0 %v936
    %1002 = vmatprep.subr.bf16.mxu0 %v939
    %1003 = vmatpush1.bf16.msra.mxu0 %v938
    %1004 = vmatprep.subr.bf16.mxu0 %v941
    %1005 = vmatpush1.bf16.msra.mxu0 %v940
    %1006 = vmatprep.subr.bf16.mxu0 %v943
    %1007 = vmatpush1.bf16.msra.mxu0 %v942
    %1008 = vmatprep.subr.bf16.mxu0 %v945
    %1009 = vmatpush1.bf16.msra.mxu0 %v944
    %1010 = vmatprep.subr.bf16.mxu0 %v947
    %1011 = vmatpush1.bf16.msra.mxu0 %v946
    %1012 = vmatprep.subr.bf16.mxu0 %v949
    %1013 = vmatpush1.bf16.msra.mxu0 %v948
    %1014 = vmatprep.subr.bf16.mxu0 %v951
    %1015 = vmatpush1.bf16.msra.mxu0 %v950
    %1016 = vmatprep.subr.bf16.mxu0 %v953
    %1017 = vmatpush1.bf16.msra.mxu0 %v952
    %1018 = vmatprep.subr.bf16.mxu0 %v955
    %1019 = vmatpush1.bf16.msra.mxu0 %v954
    %1020 = vmatprep.subr.bf16.mxu0 %v957
    %1021 = vmatpush1.bf16.msra.mxu0 %v956
    %1022 = vmatprep.subr.bf16.mxu0 %v959
    %1023 = vmatpush1.bf16.msra.mxu0 %v958
    %1024 = vmatprep.mubr.bf16.mxu0 %v787
    %1025 = vmatmul.mubr.bf16.gmra.mrb[0].mxu0 %v786
    %v1026 = vpop.f32.mrb[0].mxu0
    %v1027 = vadd.f32 %v825, %v1026
    %v1028 = vpop.f32.mrb[0].mxu0
    %v1029 = vadd.f32 %v829, %v1028
    %v1030 = vpop.f32.mrb[0].mxu0
    %v1031 = vadd.f32 %v825, %v1030
    %v1032 = vpop.f32.mrb[0].mxu0
    %v1033 = vadd.f32 %v829, %v1032
    %1034 = vdwg.mxu0
    %v1035 = vmax.f32 %v1027, 0.0
    %v1036 = vmax.f32 %v1029, 0.0
    %v1037 = vmax.f32 %v1031, 0.0
    %v1038 = vmax.f32 %v1033, 0.0
    %v1039 = vld [vmem:[%s6] sm:$0xff]
    %v1040 = vpack.c.bf16 %v1037, %v1035
    %v1041 = vpack.c.bf16 %v1038, %v1036
    %v1043 = vunpack.c.l.b16 %v1039
    %v1044 = vunpack.c.h.b16 %v1039
    %v1045 = vpack.c.b16 %v1043, %v1043
    %v1046 = vpack.c.b16 %v1044, %v1044
    %1049 = vmatprep.subr.bf16.mxu0 %v1041
    %1050 = vmatpush1.bf16.xpose.msra.mxu0 %v1040
    %1051 = vmatprep.subr.bf16.mxu0 0
    %1052 = vmatpush1.bf16.xpose.msra.mxu0 0
    %1053 = vmatprep.subr.bf16.mxu0 0
    %1054 = vmatpush1.bf16.xpose.msra.mxu0 0
    %1055 = vmatprep.subr.bf16.mxu0 0
    %1056 = vmatpush1.bf16.xpose.msra.mxu0 0
    %1057 = vmatprep.subr.bf16.mxu0 0
    %1058 = vmatpush1.bf16.xpose.msra.mxu0 0
    %1059 = vmatprep.subr.bf16.mxu0 0
    %1060 = vmatpush1.bf16.xpose.msra.mxu0 0
    %1061 = vmatprep.subr.bf16.mxu0 0
    %1062 = vmatpush1.bf16.xpose.msra.mxu0 0
    %1063 = vmatprep.subr.bf16.mxu0 0
    %1064 = vmatpush1.bf16.xpose.msra.mxu0 0
    %1065 = vmatprep.subr.bf16.mxu0 0
    %1066 = vmatpush1.bf16.xpose.msra.mxu0 0
    %1067 = vmatprep.subr.bf16.mxu0 0
    %1068 = vmatpush1.bf16.xpose.msra.mxu0 0
    %1069 = vmatprep.subr.bf16.mxu0 0
    %1070 = vmatpush1.bf16.xpose.msra.mxu0 0
    %1071 = vmatprep.subr.bf16.mxu0 0
    %1072 = vmatpush1.bf16.xpose.msra.mxu0 0
    %1073 = vmatprep.subr.bf16.mxu0 0
    %1074 = vmatpush1.bf16.xpose.msra.mxu0 0
    %1075 = vmatprep.subr.bf16.mxu0 0
    %1076 = vmatpush1.bf16.xpose.msra.mxu0 0
    %1077 = vmatprep.subr.bf16.mxu0 0
    %1078 = vmatpush1.bf16.xpose.msra.mxu0 0
    %1079 = vmatprep.subr.bf16.mxu0 0
    %1080 = vmatpush1.bf16.xpose.msra.mxu0 0
    %1081 = vmatprep.mubr.bf16.mxu0 %v1046
    %1082 = vmatmul.mubr.bf16.gmra.mrb[0].mxu0 %v1045
    %v1083 = vpop.f32.mrb[0].mxu0
    %v1084 = vadd.f32 0.0, %v1083
    %v1085 = vpop.f32.mrb[0].mxu0
    %v1086 = vpop.f32.mrb[0].mxu0
    %v1087 = vpop.f32.mrb[0].mxu0
    %1088 = vdwg.mxu0
    %s1089 = sld [smem:[#allocation2]]
    %v1090 = vstv %s1089
    %v1091 = vadd.f32 %v1084, %v1090
    %vm1092 = vcmask 122880
    %1093 = vst.msk [vmem:[#allocation3] sm:$0x1] %vm1092, %v1091
    // Predicated region
    $region34: #{lame_model_forward.1} parent=1 // pred_check
      _
    $region35: #{lame_model_forward.1} parent=1 // pred_check_branch
      %1095 = sbr.rel (0) target = $region37
    $region36: #{lame_model_forward.1} parent=1 // pred_region
      %s1097 = ssub.s32 16, 16
      %1098 = vsyncadd [#allocation4], %s1097
      %s1100 = sshll.u32 [#allocation3], 4
      %s1101 = int_to_ptr.vmem [resolvable:$true] %s1100
      %1103 = dma.vmem_to_hbm [thread:$0]  %s1101, 16, %s8, [#allocation4]
    $region37: #{lame_model_forward.1} parent=1 // pred_fallthru
      _
    // Predicated region
    $region38: #{lame_model_forward.1} parent=1 // pred_check
      _
    $region39: #{lame_model_forward.1} parent=1 // pred_check_branch
      %1105 = sbr.rel (0) target = $region41
    $region40: #{lame_model_forward.1} parent=1 // pred_region
      %1106 = dma.done [#allocation4], 16
    $region41: #{lame_model_forward.1} parent=1 // pred_fallthru
      _
    %1107 = vsyncpa [#allocation4], 1

</llo_original>
